<compile_context>
chip_gen: v5e
topology: v5e:2x2
jax: 0.10.0
libtpu: 0.0.40
codegen_flags: <defaults>
</compile_context>

<pallas_src>
import math
import jax
import jax.numpy as jnp
from jax.experimental import pallas as pl
from jax.experimental.pallas import tpu as pltpu


def _data_embedding_kernel(x_ref, w_ref, pe_ref, o_ref):
    # x_ref:  (TB, Lp, 3*c_in) f32  -- TB batch elements, circular taps concatenated
    # w_ref:  (3*c_in, TN)     f32  -- fused conv taps (constant along batch axis)
    # pe_ref: (Lp, TN)         f32  -- positional embedding (constant along batch axis)
    # o_ref:  (TB, Lp, TN)     f32
    tb, lp, k = x_ref.shape
    tn = o_ref.shape[-1]
    y = jnp.dot(x_ref[...].reshape(tb * lp, k), w_ref[...],
                preferred_element_type=jnp.float32)
    o_ref[...] = (y.reshape(tb, lp, tn) + pe_ref[...][None, :, :]).astype(o_ref.dtype)


def _round_up(x, m):
    return (x + m - 1) // m * m


def _choose_tn(d_pad, batch, prefer=512):
    """Lane tile over d_model: a multiple-of-128 divisor of d_pad.  Prefer a
    large lane-dense tile, but when the batch is tiny split d_model so the
    grid still has >= 2 parallel steps (v7x has 2 TensorCores)."""
    divisors = [tn for tn in range(128, d_pad + 1, 128) if d_pad % tn == 0]
    want_split = (batch < 2) and (d_pad >= 256)
    cands = [tn for tn in divisors
             if tn <= prefer and (not want_split or tn <= d_pad // 2)]
    return max(cands) if cands else min(divisors)


def _choose_tb(batch, l_pad, tn, target_tile_bytes=2 * 1024 * 1024):
    """Batch elements per grid step: divisor of B sized for ~2 MiB output
    tiles (HBM roofline already reached there), preferring an even number of
    batch-axis grid steps (v7x megacore), else >= 2 steps for pipelining."""
    bytes_per_b = l_pad * tn * 4  # f32 output tile rows per batch element (dominant)
    tb_max = max(1, target_tile_bytes // max(bytes_per_b, 1))
    divs = [d for d in range(1, batch + 1) if batch % d == 0 and d <= tb_max] or [1]
    even = [d for d in divs if (batch // d) % 2 == 0]
    if even:
        return max(even)
    multi = [d for d in divs if batch // d >= 2]
    if multi:
        return max(multi)
    return max(divs)


def _vmem_limit_bytes(default=32 * 1024 * 1024):
    """Per-generation scoped-VMEM limit: half of physical capacity, capped at
    64 MiB (v5e/v6e have 128 MiB, v7x only 64 MiB)."""
    try:
        cap = int(pltpu.get_tpu_info().vmem_capacity_bytes)
        return min(cap // 2, 64 * 1024 * 1024)
    except Exception:
        return default


def data_embedding(x, conv_w, pe):
    """x: (B, L, c_in) f32; conv_w: (d_model, c_in, 3) f32 (PyTorch Conv1d layout);
       pe: (max_len, d_model) f32.  Returns (B, L, d_model) f32."""
    B, L, c_in = x.shape
    d_model = conv_w.shape[0]
    assert L <= pe.shape[0], "sequence length exceeds positional-embedding max_len"

    # Fused conv taps -> single (3*c_in, d_model) matmul weight.
    w_cat = jnp.transpose(conv_w, (2, 1, 0)).reshape(3 * c_in, d_model)
    w_cat = w_cat.astype(jnp.float32)

    # Circular neighbours precomputed per batch element (x is tiny vs the
    # output; reading it 3x adds negligible HBM traffic and avoids any
    # in-kernel wrap handling).
    x_prev = jnp.roll(x, 1, axis=1)
    x_next = jnp.roll(x, -1, axis=1)
    x_cat = jnp.concatenate([x_prev, x, x_next], axis=-1).astype(jnp.float32)  # (B,L,3c)

    # Pad L to a multiple of 8 (sublanes) and d_model to a multiple of 128
    # (lane-dense stores); padded rows/cols are sliced off after the call.
    L_pad = _round_up(L, 8)
    d_pad = _round_up(d_model, 128)
    if L_pad != L:
        x_cat = jnp.pad(x_cat, ((0, 0), (0, L_pad - L), (0, 0)))
    w_pad = jnp.pad(w_cat, ((0, 0), (0, d_pad - d_model)))
    pe_pad = jnp.pad(pe[:L].astype(jnp.float32),
                     ((0, L_pad - L), (0, d_pad - d_model)))

    TN = _choose_tn(d_pad, B)
    TB = _choose_tb(B, L_pad, TN)
    grid = (B // TB, d_pad // TN)

    out = pl.pallas_call(
        _data_embedding_kernel,
        out_shape=jax.ShapeDtypeStruct((B, L_pad, d_pad), jnp.float32),
        grid_spec=pltpu.PrefetchScalarGridSpec(
            num_scalar_prefetch=0,
            grid=grid,
            in_specs=[
                pl.BlockSpec((TB, L_pad, 3 * c_in), lambda b, n: (b, 0, 0)),
                pl.BlockSpec((3 * c_in, TN), lambda b, n: (0, n)),
                pl.BlockSpec((L_pad, TN), lambda b, n: (0, n)),
            ],
            out_specs=pl.BlockSpec((TB, L_pad, TN), lambda b, n: (b, 0, n)),
        ),
        compiler_params=pltpu.CompilerParams(
            dimension_semantics=("parallel", "parallel"),
            vmem_limit_bytes=_vmem_limit_bytes(),
        ),
    )(x_cat, w_pad, pe_pad)

    return out[:, :L, :d_model]


def make_positional_embedding(d_model, max_len=5000):
    position = jnp.arange(max_len, dtype=jnp.float32)[:, None]            # (max_len, 1)
    div_term = jnp.exp(jnp.arange(0, d_model, 2, dtype=jnp.float32)
                       * (-math.log(10000.0) / d_model))                  # (d_model//2,)
    pe = jnp.zeros((max_len, d_model), dtype=jnp.float32)
    pe = pe.at[:, 0::2].set(jnp.sin(position * div_term))
    pe = pe.at[:, 1::2].set(jnp.cos(position * div_term))
    return pe


def make_conv_weight(key, c_in, d_model, kernel_size=3):
    # kaiming_normal_(mode='fan_in', nonlinearity='leaky_relu') with default
    # negative_slope=0.01 -> gain = sqrt(2 / (1 + 0.01^2)), fan_in = c_in * k.
    fan_in = c_in * kernel_size
    gain = math.sqrt(2.0 / (1.0 + 0.01 ** 2))
    std = gain / math.sqrt(fan_in)
    return std * jax.random.normal(key, (d_model, c_in, kernel_size), dtype=jnp.float32)


def reference(x, conv_w, pe):
    # Pure-JAX f32 reference: circular conv1d (k=3, pad=1) + positional embedding.
    B, L, c_in = x.shape
    x_prev = jnp.roll(x, 1, axis=1)
    x_next = jnp.roll(x, -1, axis=1)
    w0 = conv_w[:, :, 0].T   # (c_in, d_model)
    w1 = conv_w[:, :, 1].T
    w2 = conv_w[:, :, 2].T
    y = x_prev @ w0 + x @ w1 + x_next @ w2
    return y + pe[None, :L]


if __name__ == "__main__":
    B, L, c_in, d_model = 2, 8, 4, 32

    key = jax.random.PRNGKey(0)
    k_x, k_w = jax.random.split(key)

    x = jax.random.normal(k_x, (B, L, c_in), dtype=jnp.float32)
    conv_w = make_conv_weight(k_w, c_in, d_model)
    pe = make_positional_embedding(d_model)

    out = data_embedding(x, conv_w, pe)
    out = jax.block_until_ready(out)

    ref = reference(x, conv_w, pe)
    assert out.shape == (B, L, d_model)
    # f32 operands; MXU may use bf16 multiply passes at default precision ->
    # keep a modest tolerance.
    max_err = float(jnp.max(jnp.abs(out - ref)))
    assert jnp.allclose(out, ref, atol=2e-2, rtol=2e-2), f"max abs err {max_err}"

    print("KERNEL_OK")
</pallas_src>

<mosaic_0001>
module attributes {stable_mosaic.version = 11 : i64} {
  func.func @_data_embedding_kernel(%arg0: i32, %arg1: i32, %arg2: memref<1x8x12xf32, #tpu.memory_space<vmem>>, %arg3: memref<12x128xf32, #tpu.memory_space<vmem>>, %arg4: memref<8x128xf32, #tpu.memory_space<vmem>>, %arg5: memref<1x8x128xf32, #tpu.memory_space<vmem>>) attributes {dimension_semantics = [#tpu.dimension_semantics<parallel>, #tpu.dimension_semantics<parallel>], iteration_bounds = array<i64: 2, 1>, scalar_prefetch = 0 : i64, scratch_operands = 0 : i64, tpu.core_type = #tpu.core_type<tc>, window_params = [{transform_indices = @transform_0, window_bounds = array<i64: 1, 8, 12>}, {transform_indices = @transform_1, window_bounds = array<i64: 12, 128>}, {transform_indices = @transform_2, window_bounds = array<i64: 8, 128>}, {transform_indices = @transform_3, window_bounds = array<i64: 1, 8, 128>}]} {
    %c0 = arith.constant 0 : index
    %c0_0 = arith.constant 0 : index
    %c0_1 = arith.constant 0 : index
    %0 = vector.load %arg2[%c0, %c0_0, %c0_1] : memref<1x8x12xf32, #tpu.memory_space<vmem>>, vector<1x8x12xf32>
    %1 = vector.shape_cast %0 : vector<1x8x12xf32> to vector<8x12xf32>
    %c0_2 = arith.constant 0 : index
    %c0_3 = arith.constant 0 : index
    %2 = vector.load %arg3[%c0_2, %c0_3] : memref<12x128xf32, #tpu.memory_space<vmem>>, vector<12x128xf32>
    %cst = arith.constant dense<0.000000e+00> : vector<8x128xf32>
    %3 = tpu.matmul %1, %2, %cst {dimension_numbers = #tpu.dot_dimension_numbers<[1], [0], [0], [1], [0, 0, 1, 1], [], []>} : vector<8x12xf32>, vector<12x128xf32>, vector<8x128xf32> -> vector<8x128xf32>
    %4 = vector.shape_cast %3 : vector<8x128xf32> to vector<1x8x128xf32>
    %c0_4 = arith.constant 0 : index
    %c0_5 = arith.constant 0 : index
    %5 = vector.load %arg4[%c0_4, %c0_5] : memref<8x128xf32, #tpu.memory_space<vmem>>, vector<8x128xf32>
    %6 = vector.shape_cast %5 : vector<8x128xf32> to vector<1x8x128xf32>
    %7 = arith.addf %4, %6 : vector<1x8x128xf32>
    %c0_6 = arith.constant 0 : index
    %c0_7 = arith.constant 0 : index
    %c0_8 = arith.constant 0 : index
    %8 = vector.load %arg5[%c0_6, %c0_7, %c0_8] : memref<1x8x128xf32, #tpu.memory_space<vmem>>, vector<1x8x128xf32>
    tpu.vector_store %arg5[%c0_6, %c0_7, %c0_8], %7 {strides = array<i32>} : memref<1x8x128xf32, #tpu.memory_space<vmem>>, vector<1x8x128xf32>,
    return
  }
  func.func @transform_0(%arg0: i32, %arg1: i32) -> (i32, i32, i32) {
    %c0_i32 = arith.constant 0 : i32
    %c0_i32_0 = arith.constant 0 : i32
    %c0_i32_1 = arith.constant 0 : i32
    return %arg0, %c0_i32, %c0_i32_0 : i32, i32, i32
  }
  func.func @transform_1(%arg0: i32, %arg1: i32) -> (i32, i32) {
    %c0_i32 = arith.constant 0 : i32
    %c0_i32_0 = arith.constant 0 : i32
    return %c0_i32, %arg1 : i32, i32
  }
  func.func @transform_2(%arg0: i32, %arg1: i32) -> (i32, i32) {
    %c0_i32 = arith.constant 0 : i32
    %c0_i32_0 = arith.constant 0 : i32
    return %c0_i32, %arg1 : i32, i32
  }
  func.func @transform_3(%arg0: i32, %arg1: i32) -> (i32, i32, i32) {
    %c0_i32 = arith.constant 0 : i32
    %c0_i32_0 = arith.constant 0 : i32
    return %arg0, %c0_i32, %arg1 : i32, i32, i32
  }
}

</mosaic_0001>

<llo_original>
// kernel: tpu_custom_call.1
$region0: #{tpu_custom_call.1}
  #allocation0 [shape = 'u32[]', space=smem, size = 0x4, offset = 0x4, fixed_abs, tag = 'smem constant byte address 0x4 - core index']
  #allocation1 [shape = 'u32[72,128]{1,0:T(1,128)}', space=vmem, size = 0x9000, scoped, tag = 'internal scratch']
  %s0 = inlined_call_operand.hbm [shape: f32[2,8,12], index: 0, kind: input, shape index: {}]
  %s1 = inlined_call_operand.hbm [shape: f32[12,128], index: 1, kind: input, shape index: {}]
  %s2 = inlined_call_operand.hbm [shape: f32[8,128], index: 2, kind: input, shape index: {}]
  %s3 = inlined_call_operand.hbm [shape: f32[2,8,128], index: 3, kind: output, shape index: {}]
  %s4 = sld [smem:[#allocation0]]
  $region57: #{tpu_custom_call.1} parent=0
    _
  %s6 = ssub.s32 1, %s4
  %s7 = scalar_select 0, %s6, %s4
  $region1: #{tpu_custom_call.1} parent=0
    #allocation2 [shape = 'u8[8192]{0}', space=vmem, size = 0x2000, scoped, tag = 'input window, operand 0']
    #allocation3 [shape = 's32[2]{0}', space=sflag, size = 0x8, scoped, tag = 'scoped memory for tpu_custom_call.1']
    #allocation4 [shape = 's32[2]{0}', space=sflag, size = 0x8, scoped, tag = 'scoped memory for tpu_custom_call.1']
    #allocation5 [shape = 'u8[8192]{0}', space=vmem, size = 0x2000, scoped, tag = 'input window, operand 1, single buffered']
    #allocation6 [shape = 's32[1]{0}', space=sflag, size = 0x4, scoped, tag = 'scoped memory for tpu_custom_call.1']
    #allocation7 [shape = 'u8[4096]{0}', space=vmem, size = 0x1000, scoped, tag = 'input window, operand 2, single buffered']
    #allocation8 [shape = 'u8[8192]{0}', space=vmem, size = 0x2000, scoped, tag = 'output window, operand 0']
    %8 = vsyncpa [#allocation3], 0
    %s9 = scalar_lea.sflag [#allocation3], 1
    %10 = vsyncpa %s9, 0
    %11 = vsyncpa [#allocation6], 0
    %12 = vsyncpa [#allocation4], 0
    %s13 = scalar_lea.sflag [#allocation4], 1
    %14 = vsyncpa %s13, 0
    loop: start=0, step=1, limit=4
    $region2: #{tpu_custom_call.1} parent=1 // loop_pre_header
      _
    $region3: #{tpu_custom_call.1} parent=1 // loop_header
      %s16 = sphi 0, %s20
      %p17 = scmp.ge.s32.totalorder %s16, 4
      %s23 = sphi 0, %s35
      %s24 = sphi 0, %s31
      %s25 = sphi 0, %s23
      %s26 = sphi 0, %s24
      %s27 = sphi 0, %s25
      %s28 = sphi 0, %s26
      %s38 = sphi 0, %s40
      %s41 = sphi 0, %s38
      %s42 = sphi 0, %s41
      %s58 = sphi 0, %s42
      %s64 = sphi 0, %s66
      %s67 = sphi 0, %s64
      %s68 = sphi 0, %s67
      %s84 = sphi 0, %s68
      %s90 = sphi 0, %s92
      %s93 = sphi 0, %s90
      %s94 = sphi 0, %s93
      %s110 = sphi 0, %s94
      %s118 = sphi 0, %s120
      %s121 = sphi 0, %s118
      %s122 = sphi 0, %s121
      %s138 = sphi 0, %s122
    $region4: #{tpu_custom_call.1} parent=1 // loop_header_branch
      %19 = sbr.rel (%p17) target = $region8
    $region5: #{tpu_custom_call.1} parent=1 // loop_body
      %s21 = ssub.s32 %s16, 1
      %s22 = ssub.s32 %s16, 2
      %s29 = sadd.s32 1, %s24
      %p30 = scmp.ge.s32.totalorder %s29, 1
      %s31 = scalar_select %p30, 0, %s29
      %s32 = sadd.s32 1, %s23
      %s33 = scalar_select %p30, %s32, %s23
      %p34 = scmp.ge.s32.totalorder %s33, 2
      %s35 = scalar_select %p34, 0, %s33
      %s36 = ssub.s32 %s23, %s35
      %p37 = scmp.eq.s32.totalorder %s36, 0
      %s39 = sadd.s32 %s38, 1
      %s40 = scalar_select %p37, %s38, %s39
      %p43 = pneg %p37
      %p44 = scmp.eq.s32.totalorder %s16, 1
      %p45 = por %p43, %p44
      %p46 = scmp.ne.s32.totalorder %s38, %s41
      %p47 = scmp.eq.s32.totalorder %s16, 0
      %p48 = por %p46, %p47
      %p49 = scmp.ne.s32.totalorder %s38, %s41
      %p50 = scmp.eq.s32.totalorder %s21, 1
      %p51 = por %p49, %p50
      %p52 = scmp.ne.s32.totalorder %s41, %s42
      %p53 = scmp.eq.s32.totalorder %s21, 0
      %p54 = por %p52, %p53
      %p55 = scmp.ne.s32.totalorder %s41, %s42
      %p56 = scmp.eq.s32.totalorder %s22, 1
      %p57 = por %p55, %p56
      %p59 = scmp.ne.s32.totalorder %s42, %s58
      %p60 = scmp.eq.s32.totalorder %s22, 0
      %p61 = por %p59, %p60
      %s62 = ssub.s32 %s24, %s31
      %p63 = scmp.eq.s32.totalorder %s62, 0
      %s65 = sadd.s32 %s64, 1
      %s66 = scalar_select %p63, %s64, %s65
      %p69 = pneg %p63
      %p70 = scmp.eq.s32.totalorder %s16, 1
      %p71 = por %p69, %p70
      %p72 = scmp.ne.s32.totalorder %s64, %s67
      %p73 = scmp.eq.s32.totalorder %s16, 0
      %p74 = por %p72, %p73
      %p75 = scmp.ne.s32.totalorder %s64, %s67
      %p76 = scmp.eq.s32.totalorder %s21, 1
      %p77 = por %p75, %p76
      %p78 = scmp.ne.s32.totalorder %s67, %s68
      %p79 = scmp.eq.s32.totalorder %s21, 0
      %p80 = por %p78, %p79
      %p81 = scmp.ne.s32.totalorder %s67, %s68
      %p82 = scmp.eq.s32.totalorder %s22, 1
      %p83 = por %p81, %p82
      %p85 = scmp.ne.s32.totalorder %s68, %s84
      %p86 = scmp.eq.s32.totalorder %s22, 0
      %p87 = por %p85, %p86
      %s88 = ssub.s32 %s24, %s31
      %p89 = scmp.eq.s32.totalorder %s88, 0
      %s91 = sadd.s32 %s90, 1
      %s92 = scalar_select %p89, %s90, %s91
      %p95 = pneg %p89
      %p96 = scmp.eq.s32.totalorder %s16, 1
      %p97 = por %p95, %p96
      %p98 = scmp.ne.s32.totalorder %s90, %s93
      %p99 = scmp.eq.s32.totalorder %s16, 0
      %p100 = por %p98, %p99
      %p101 = scmp.ne.s32.totalorder %s90, %s93
      %p102 = scmp.eq.s32.totalorder %s21, 1
      %p103 = por %p101, %p102
      %p104 = scmp.ne.s32.totalorder %s93, %s94
      %p105 = scmp.eq.s32.totalorder %s21, 0
      %p106 = por %p104, %p105
      %p107 = scmp.ne.s32.totalorder %s93, %s94
      %p108 = scmp.eq.s32.totalorder %s22, 1
      %p109 = por %p107, %p108
      %p111 = scmp.ne.s32.totalorder %s94, %s110
      %p112 = scmp.eq.s32.totalorder %s22, 0
      %p113 = por %p111, %p112
      %s114 = ssub.s32 %s23, %s35
      %s115 = ssub.s32 %s24, %s31
      %s116 = sor.u32 %s114, %s115
      %p117 = scmp.eq.s32.totalorder %s116, 0
      %s119 = sadd.s32 %s118, 1
      %s120 = scalar_select %p117, %s118, %s119
      %p123 = pneg %p117
      %p124 = scmp.eq.s32.totalorder %s16, 1
      %p125 = por %p123, %p124
      %p126 = scmp.ne.s32.totalorder %s118, %s121
      %p127 = scmp.eq.s32.totalorder %s16, 0
      %p128 = por %p126, %p127
      %p129 = scmp.ne.s32.totalorder %s118, %s121
      %p130 = scmp.eq.s32.totalorder %s21, 1
      %p131 = por %p129, %p130
      %p132 = scmp.ne.s32.totalorder %s121, %s122
      %p133 = scmp.eq.s32.totalorder %s21, 0
      %p134 = por %p132, %p133
      %p135 = scmp.ne.s32.totalorder %s121, %s122
      %p136 = scmp.eq.s32.totalorder %s22, 1
      %p137 = por %p135, %p136
      %p139 = scmp.ne.s32.totalorder %s122, %s138
      %p140 = scmp.eq.s32.totalorder %s22, 0
      %p141 = por %p139, %p140
      %p142 = scmp.le.s32.totalorder 1, %s16
      %p143 = scmp.lt.s32.totalorder %s16, 3
      %p144 = pnand %p142, %p143
      %p145 = pneg %p144
      // Predicated region
      $region9: #{tpu_custom_call.1} parent=5 // pred_check
        _
      $region10: #{tpu_custom_call.1} parent=5 // pred_check_branch
        %147 = sbr.rel (%p144) target = $region12
      $region11: #{tpu_custom_call.1} parent=5 // pred_region
        %s148 = ssub.s32 %s16, 1
        // Predicated region
        $region13: #{tpu_custom_call.1} parent=11 // pred_check
          %p149 = pneg %p80
        $region14: #{tpu_custom_call.1} parent=11 // pred_check_branch
          %151 = sbr.rel (%p149) target = $region16
        $region15: #{tpu_custom_call.1} parent=11 // pred_region
          %153 = vsyncadd [#allocation6], 0
          %s154 = smul.addr %s26, 8
          %s155 = scalar_lea.hbm %s1, %s154
          %s156 = sshll.u32 %s155, 4
          %s157 = int_to_ptr.hbm [resolvable:$true] %s156
          %s158 = sshll.u32 [#allocation5], 4
          %s159 = int_to_ptr.vmem [resolvable:$true] %s158
          %164 = dma.hbm_to_vmem [thread:$0]  %s157, 256, %s159, [#allocation6], 128, 128, 8
        $region16: #{tpu_custom_call.1} parent=11 // pred_fallthru
          _
        // Predicated region
        $region17: #{tpu_custom_call.1} parent=11 // pred_check
          %p165 = pneg %p106
        $region18: #{tpu_custom_call.1} parent=11 // pred_check_branch
          %167 = sbr.rel (%p165) target = $region20
        $region19: #{tpu_custom_call.1} parent=11 // pred_region
          %169 = vsyncadd [#allocation6], 0
          %s170 = smul.addr %s26, 8
          %s171 = scalar_lea.hbm %s2, %s170
          %s173 = sshll.u32 %s171, 4
          %s174 = int_to_ptr.hbm [resolvable:$true] %s173
          %s175 = sshll.u32 [#allocation7], 4
          %s176 = int_to_ptr.vmem [resolvable:$true] %s175
          %178 = dma.hbm_to_vmem [thread:$0]  %s174, 128, %s176, [#allocation6]
        $region20: #{tpu_custom_call.1} parent=11 // pred_fallthru
          _
      $region12: #{tpu_custom_call.1} parent=5 // pred_fallthru
        _
      %p179 = scmp.lt.s32.totalorder %s16, 2
      // Predicated region
      $region21: #{tpu_custom_call.1} parent=5 // pred_check
        %p180 = pneg %p179
      $region22: #{tpu_custom_call.1} parent=5 // pred_check_branch
        %182 = sbr.rel (%p180) target = $region24
      $region23: #{tpu_custom_call.1} parent=5 // pred_region
        // Predicated region
        $region25: #{tpu_custom_call.1} parent=23 // pred_check
          %p183 = pneg %p48
        $region26: #{tpu_custom_call.1} parent=23 // pred_check_branch
          %185 = sbr.rel (%p183) target = $region28
        $region27: #{tpu_custom_call.1} parent=23 // pred_region
          %s186 = sand.u32 %s38, 1
          %s187 = scalar_lea.sflag [#allocation3], %s186
          %s188 = sand.u32 %s38, 1
          %s189 = smul.addr %s188, 8
          %s190 = scalar_lea.vmem [#allocation2], %s189
          %192 = vsyncadd %s187, 0
          %s193 = smul.addr %s23, 8
          %s194 = scalar_lea.hbm %s0, %s193
          %s196 = sshll.u32 %s194, 4
          %s197 = int_to_ptr.hbm [resolvable:$true] %s196
          %s198 = sshll.u32 %s190, 4
          %s199 = int_to_ptr.vmem [resolvable:$true] %s198
          %201 = dma.hbm_to_vmem [thread:$0]  %s197, 128, %s199, %s187
        $region28: #{tpu_custom_call.1} parent=23 // pred_fallthru
          _
      $region24: #{tpu_custom_call.1} parent=5 // pred_fallthru
        _
      %p202 = scmp.le.s32.totalorder 1, %s16
      %p203 = scmp.lt.s32.totalorder %s16, 3
      %p204 = pnand %p202, %p203
      %p205 = pneg %p204
      // Predicated region
      $region29: #{tpu_custom_call.1} parent=5 // pred_check
        _
      $region30: #{tpu_custom_call.1} parent=5 // pred_check_branch
        %207 = sbr.rel (%p204) target = $region32
      $region31: #{tpu_custom_call.1} parent=5 // pred_region
        %s208 = ssub.s32 %s16, 1
        %s209 = sand.u32 %s41, 1
        %s210 = scalar_lea.sflag [#allocation3], %s209
        %s211 = sand.u32 %s41, 1
        %s212 = smul.addr %s211, 8
        %s213 = scalar_lea.vmem [#allocation2], %s212
        // Predicated region
        $region33: #{tpu_custom_call.1} parent=31 // pred_check
          %p214 = pneg %p54
        $region34: #{tpu_custom_call.1} parent=31 // pred_check_branch
          %216 = sbr.rel (%p214) target = $region36
        $region35: #{tpu_custom_call.1} parent=31 // pred_region
          %218 = dma.done %s210, 128
        $region36: #{tpu_custom_call.1} parent=31 // pred_fallthru
          _
        // Predicated region
        $region37: #{tpu_custom_call.1} parent=31 // pred_check
          %p219 = pneg %p80
        $region38: #{tpu_custom_call.1} parent=31 // pred_check_branch
          %221 = sbr.rel (%p219) target = $region40
        $region39: #{tpu_custom_call.1} parent=31 // pred_region
          %223 = dma.done [#allocation6], 256
        $region40: #{tpu_custom_call.1} parent=31 // pred_fallthru
          _
        // Predicated region
        $region41: #{tpu_custom_call.1} parent=31 // pred_check
          %p224 = pneg %p106
        $region42: #{tpu_custom_call.1} parent=31 // pred_check_branch
          %226 = sbr.rel (%p224) target = $region44
        $region43: #{tpu_custom_call.1} parent=31 // pred_region
          %228 = dma.done [#allocation6], 128
        $region44: #{tpu_custom_call.1} parent=31 // pred_fallthru
          _
        %s229 = sand.u32 %s41, 1
        %s230 = scalar_lea.sflag [#allocation3], %s229
        %s231 = sand.u32 %s41, 1
        %s232 = smul.addr %s231, 8
        %s233 = scalar_lea.vmem [#allocation2], %s232
        %p234 = pneg %p54
        %p235 = pneg %p51
        %p236 = pneg %p80
        %p237 = pneg %p77
        %p238 = pneg %p106
        %p239 = pneg %p103
        %p240 = pneg %p134
        %p241 = pneg %p131
        %s242 = sand.u32 %s121, 1
        %s243 = scalar_lea.sflag [#allocation4], %s242
        %s244 = sand.u32 %s121, 1
        %s245 = smul.addr %s244, 8
        %s246 = scalar_lea.vmem [#allocation8], %s245
        %v247 = vld [vmem:[%s213] sm:$0xff]
        %v248 = vld [vmem:[#allocation5] sm:$0xff]
        %v249 = vld [vmem:[#allocation5 + $0x8] sm:$0xf]
        %vm250 = vcmask 97280
        %v252 = vsel %vm250, %v247, 0
        %vm254 = vcmask 1043456
        %v256 = vsel %vm254, %v249, 0
        %258 = vmatpush.msra.mxu0 0.0
        %259 = vmatpush.msra.mxu0 0.0
        %260 = vmatpush.msra.mxu0 0.0
        %261 = vmatpush.msra.mxu0 0.0
        %262 = vmatpush.msra.mxu0 0.0
        %263 = vmatpush.msra.mxu0 0.0
        %264 = vmatpush.msra.mxu0 0.0
        %265 = vmatpush.msra.mxu0 0.0
        %266 = vmatpush.msra.mxu0 0.0
        %267 = vmatpush.msra.mxu0 0.0
        %268 = vmatpush.msra.mxu0 0.0
        %269 = vmatpush.msra.mxu0 0.0
        %270 = vmatpush.msra.mxu0 0.0
        %271 = vmatpush.msra.mxu0 0.0
        %272 = vmatpush.msra.mxu0 %v256
        %273 = vmatpush.msra.mxu0 %v248
        %274 = vmatmul.f32.gmra.mxu0 %v252
        %v275 = vpop.f32.mrf.mxu0
        %v276 = vadd.f32 0.0, %v275
        %277 = vdwg.mxu0
        %v278 = vld [vmem:[#allocation7] sm:$0xff]
        %v279 = vadd.f32 %v276, %v278
        %280 = vst [vmem:[%s246] sm:$0xff] %v279
        %s281 = sand.u32 %s121, 1
        %s282 = scalar_lea.sflag [#allocation4], %s281
        %s283 = sand.u32 %s121, 1
        %s284 = smul.addr %s283, 8
        %s285 = scalar_lea.vmem [#allocation8], %s284
        // Predicated region
        $region45: #{tpu_custom_call.1} parent=31 // pred_check
          %p286 = pneg %p131
        $region46: #{tpu_custom_call.1} parent=31 // pred_check_branch
          %288 = sbr.rel (%p286) target = $region48
        $region47: #{tpu_custom_call.1} parent=31 // pred_region
          %290 = vsyncadd %s282, 0
          %s291 = sadd.s32 %s26, %s25
          %s292 = smul.addr %s291, 8
          %s293 = scalar_lea.hbm %s3, %s292
          %s295 = sshll.u32 %s285, 4
          %s296 = int_to_ptr.vmem [resolvable:$true] %s295
          %s297 = sshll.u32 %s293, 4
          %s298 = int_to_ptr.hbm [resolvable:$true] %s297
          %300 = dma.vmem_to_hbm [thread:$0]  %s296, 128, %s298, %s282
        $region48: #{tpu_custom_call.1} parent=31 // pred_fallthru
          _
      $region32: #{tpu_custom_call.1} parent=5 // pred_fallthru
        _
      %p301 = scmp.le.s32.totalorder 2, %s16
      // Predicated region
      $region49: #{tpu_custom_call.1} parent=5 // pred_check
        %p302 = pneg %p301
      $region50: #{tpu_custom_call.1} parent=5 // pred_check_branch
        %304 = sbr.rel (%p302) target = $region52
      $region51: #{tpu_custom_call.1} parent=5 // pred_region
        %s305 = ssub.s32 %s16, 2
        // Predicated region
        $region53: #{tpu_custom_call.1} parent=51 // pred_check
          %p306 = pneg %p137
        $region54: #{tpu_custom_call.1} parent=51 // pred_check_branch
          %308 = sbr.rel (%p306) target = $region56
        $region55: #{tpu_custom_call.1} parent=51 // pred_region
          %s309 = sand.u32 %s122, 1
          %s310 = scalar_lea.sflag [#allocation4], %s309
          %s311 = sand.u32 %s122, 1
          %s312 = smul.addr %s311, 8
          %s313 = scalar_lea.vmem [#allocation8], %s312
          %315 = dma.done %s310, 128
        $region56: #{tpu_custom_call.1} parent=51 // pred_fallthru
          _
      $region52: #{tpu_custom_call.1} parent=5 // pred_fallthru
        _
    $region6: #{tpu_custom_call.1} parent=1 // loop_footer
      %s20 = sadd.s32 1, %s16
    $region7: #{tpu_custom_call.1} parent=1 // loop_footer_branch
      %15 = sbr.rel target = $region3
    $region8: #{tpu_custom_call.1} parent=1 // loop_exit
      _
    %316 = vsyncpa [#allocation3], 1
    %s317 = scalar_lea.sflag [#allocation3], 1
    %318 = vsyncpa %s317, 1
    %319 = vsyncpa [#allocation6], 1
    %320 = vsyncpa [#allocation4], 1
    %s321 = scalar_lea.sflag [#allocation4], 1
    %322 = vsyncpa %s321, 1

</llo_original>
